<compile_context>
chip_gen: v5e
topology: v5e:2x2
jax: 0.10.0
libtpu: 0.0.40
codegen_flags: <defaults>
</compile_context>

<pallas_src>
import jax
import jax.numpy as jnp
from jax import lax
from jax.experimental import pallas as pl
from jax.experimental.pallas import tpu as pltpu

VOCAB = 256    # synthetic vocab size (real Qwen2 ~151936 -> needs HBM gather path)
HIDDEN = 128   # synthetic hidden size (real Qwen2 >= 896)

# Gates for the VMEM-resident one-hot MXU gather path.
MAX_ONEHOT_VOCAB = 2048            # beyond this the T*V*D MACs dwarf the gather
MAX_TABLE_BYTES = 4 * 1024 * 1024  # table must comfortably fit VMEM (single copy)
ONEHOT_ELEMS_BUDGET = 256 * 1024   # bound on t_block * V (one-hot temporary)
OUT_TILE_BYTES_TARGET = 1 << 20    # ~1 MiB f32 output tile per grid step
T_BLOCK_CAP = 2048


def _round_up(x, m):
    return (x + m - 1) // m * m


def _pick_t_block(T, V, D):
    """Token block sized by output bytes, bounded by the one-hot temporary."""
    tb = OUT_TILE_BYTES_TARGET // (D * 4)       # ~1 MiB f32 output tile
    tb = min(tb, T_BLOCK_CAP)
    tb = min(tb, ONEHOT_ELEMS_BUDGET // V)      # keep (t_block, V) one-hot small
    tb = max(8, (tb // 8) * 8)                  # sublane-align
    tb = min(tb, _round_up(T, 8))               # never exceed (padded) token count
    return tb


def embedding_kernel(ids_ref, table_ref, out_ref):
    # ids_ref:   VMEM (t_block, 1) int32   -- token ids for this grid step
    # table_ref: VMEM (V, D)               -- full embedding table (fetched once)
    # out_ref:   VMEM (t_block, D) f32     -- output tile for this grid step
    V = table_ref.shape[0]

    # Clamp ids so out-of-range tokens have well-defined behavior
    # (PyTorch would raise; we return row V-1's embedding).
    ids = jnp.clip(ids_ref[...], 0, V - 1)                    # (t_block, 1)

    # Vectorized gather via one-hot matmul on the MXU:
    #   one_hot[t, v] = (ids[t] == v);  out = one_hot @ table  (f32 accumulate)
    # The iota is only (1, V); the compare broadcasts it against the (t_block, 1)
    # ids column, avoiding a full (t_block, V) iota materialization every step.
    col = lax.broadcasted_iota(jnp.int32, (1, V), 1)           # (1, V)
    one_hot = (ids == col).astype(table_ref.dtype)             # single cmp + cast

    # Exact vs. gather+upcast for bf16 tables (one 1.0 weight per row, f32 acc);
    # pin HIGHEST precision if a float32 table is ever supplied.
    prec = lax.Precision.HIGHEST if table_ref.dtype == jnp.float32 else None

    # Single full-tile f32 result -> one unmasked, lane-dense store.
    out_ref[...] = jnp.dot(one_hot, table_ref[...],
                           preferred_element_type=jnp.float32,
                           precision=prec)


def embedding_forward(input_ids, embed_table):
    """input_ids: (B, S) int, embed_table: (V, D) -> (B, S, D) float32."""
    B, S = input_ids.shape
    V, D = embed_table.shape
    T = B * S

    table_bytes = V * D * embed_table.dtype.itemsize
    # Gate the one-hot MXU path on both table bytes and vocab size (FLOPs):
    # beyond ~2K vocab the redundant MACs dominate and the kernel would become
    # MXU-bound instead of writeback-bound.
    assert V <= MAX_ONEHOT_VOCAB and table_bytes <= MAX_TABLE_BYTES, (
        "vocab/table too large for the VMEM-resident one-hot gather path; "
        "use an HBM (pl.ANY) + DMA row-gather kernel instead")
    # TODO(synk): implement the HBM/pl.ANY scalar-prefetch row-gather path for
    # the real Qwen2 151936-row table.

    t_block = _pick_t_block(T, V, D)
    T_pad = _round_up(T, t_block)

    flat_ids = input_ids.reshape(T).astype(jnp.int32)
    flat_ids = jnp.pad(flat_ids, (0, T_pad - T))   # pad with id 0 (sliced off below)
    ids_col = flat_ids.reshape(T_pad, 1)

    # VMEM budget: table (kept conservative at 2x in case single-buffering is
    # unavailable) + double-buffered f32 out tiles + double-buffered lane-padded
    # ids blocks + headroom for the (t_block, V) one-hot / compare temporaries.
    out_tile_bytes = t_block * D * 4
    ids_tile_bytes = t_block * 128 * 4        # (t_block, 1) lane-pads to 128 lanes
    onehot_bytes = t_block * V * 4
    vmem_limit = (2 * table_bytes + 2 * out_tile_bytes + 2 * ids_tile_bytes
                  + 2 * onehot_bytes + (4 << 20))
    vmem_limit = min(max(vmem_limit, 16 << 20), 64 << 20)

    def make_call(single_buffer_table):
        if single_buffer_table:
            # Constant index_map -> the second buffer is never used; single-buffer
            # to buy back VMEM (matters most on v7x 64 MiB / v5e 16 MiB scoped).
            table_spec = pl.BlockSpec((V, D), lambda i: (0, 0),
                                      pipeline_mode=pl.Buffered(1))
        else:
            table_spec = pl.BlockSpec((V, D), lambda i: (0, 0))
        return pl.pallas_call(
            embedding_kernel,
            out_shape=jax.ShapeDtypeStruct((T_pad, D), jnp.float32),
            grid_spec=pltpu.PrefetchScalarGridSpec(
                num_scalar_prefetch=0,
                grid=(T_pad // t_block,),
                in_specs=[
                    # per-step token ids (column layout broadcasts cheaply)
                    pl.BlockSpec((t_block, 1), lambda i: (i, 0)),
                    # full table, constant block index -> fetched once per core
                    table_spec,
                ],
                out_specs=pl.BlockSpec((t_block, D), lambda i: (i, 0)),
            ),
            compiler_params=pltpu.CompilerParams(
                dimension_semantics=("parallel",),   # no carried state across blocks
                vmem_limit_bytes=vmem_limit,
            ),
        )

    try:
        out_flat = make_call(True)(ids_col, embed_table)
    except Exception:
        # Fallback for jax versions where pl.Buffered(1) (single buffering) is
        # not accepted on a pallas_call BlockSpec.
        out_flat = make_call(False)(ids_col, embed_table)

    return out_flat[:T].reshape(B, S, D)


if __name__ == "__main__":
    key = jax.random.PRNGKey(0)
    k_ids, k_tab = jax.random.split(key)

    B, S = 2, 8
    input_ids = jax.random.randint(k_ids, (B, S), 0, VOCAB, dtype=jnp.int32)
    # Deterministic synthetic embedding table (stands in for transformer.embed_tokens.weight)
    embed_table = (jax.random.normal(k_tab, (VOCAB, HIDDEN), dtype=jnp.float32) * 0.02
                   ).astype(jnp.bfloat16)

    out = embedding_forward(input_ids, embed_table)
    out = jax.block_until_ready(out)

    # Reference check: out == embed_table[input_ids].float()
    ref = embed_table[input_ids].astype(jnp.float32)
    assert out.shape == (B, S, HIDDEN) and out.dtype == jnp.float32
    assert jnp.allclose(out, ref), "mismatch vs. reference gather"

    print("KERNEL_OK")
</pallas_src>

<mosaic_0001>
module attributes {stable_mosaic.version = 11 : i64} {
  func.func @embedding_kernel(%arg0: i32, %arg1: memref<16x1xi32, #tpu.memory_space<vmem>>, %arg2: memref<256x128xbf16, #tpu.memory_space<vmem>>, %arg3: memref<16x128xf32, #tpu.memory_space<vmem>>) attributes {dimension_semantics = [#tpu.dimension_semantics<parallel>], iteration_bounds = array<i64: 1>, scalar_prefetch = 0 : i64, scratch_operands = 0 : i64, tpu.core_type = #tpu.core_type<tc>, window_params = [{transform_indices = @transform_0, window_bounds = array<i64: 16, 1>}, {pipeline_mode = #tpu.pipeline_mode<synchronous>, transform_indices = @transform_1, window_bounds = array<i64: 256, 128>}, {transform_indices = @transform_2, window_bounds = array<i64: 16, 128>}]} {
    %c0 = arith.constant 0 : index
    %c0_0 = arith.constant 0 : index
    %0 = vector.load %arg1[%c0, %c0_0] : memref<16x1xi32, #tpu.memory_space<vmem>>, vector<16x1xi32>
    %c0_i32 = arith.constant 0 : i32
    %c255_i32 = arith.constant 255 : i32
    %1 = vector.broadcast %c0_i32 : i32 to vector<16x1xi32>
    %2 = arith.maxsi %1, %0 : vector<16x1xi32>
    %3 = vector.broadcast %c255_i32 : i32 to vector<16x1xi32>
    %4 = arith.minsi %3, %2 : vector<16x1xi32>
    %5 = tpu.iota {dimensions = array<i32: 1>} : vector<1x256xi32>
    %6 = vector.broadcast %4 : vector<16x1xi32> to vector<16x256xi32>
    %7 = vector.broadcast %5 : vector<1x256xi32> to vector<16x256xi32>
    %8 = arith.cmpi eq, %6, %7 : vector<16x256xi32>
    %9 = arith.extui %8 : vector<16x256xi1> to vector<16x256xi32>
    %10 = arith.sitofp %9 : vector<16x256xi32> to vector<16x256xf32>
    %11 = arith.truncf %10 : vector<16x256xf32> to vector<16x256xbf16>
    %c0_1 = arith.constant 0 : index
    %c0_2 = arith.constant 0 : index
    %12 = vector.load %arg2[%c0_1, %c0_2] : memref<256x128xbf16, #tpu.memory_space<vmem>>, vector<256x128xbf16>
    %cst = arith.constant dense<0.000000e+00> : vector<16x128xf32>
    %13 = tpu.matmul %11, %12, %cst {dimension_numbers = #tpu.dot_dimension_numbers<[1], [0], [0], [1], [0, 0, 1, 1], [], []>} : vector<16x256xbf16>, vector<256x128xbf16>, vector<16x128xf32> -> vector<16x128xf32>
    %c0_3 = arith.constant 0 : index
    %c0_4 = arith.constant 0 : index
    %14 = vector.load %arg3[%c0_3, %c0_4] : memref<16x128xf32, #tpu.memory_space<vmem>>, vector<16x128xf32>
    tpu.vector_store %arg3[%c0_3, %c0_4], %13 {strides = array<i32>} : memref<16x128xf32, #tpu.memory_space<vmem>>, vector<16x128xf32>,
    return
  }
  func.func @transform_0(%arg0: i32) -> (i32, i32) {
    %c0_i32 = arith.constant 0 : i32
    %c0_i32_0 = arith.constant 0 : i32
    return %arg0, %c0_i32 : i32, i32
  }
  func.func @transform_1(%arg0: i32) -> (i32, i32) {
    %c0_i32 = arith.constant 0 : i32
    %c0_i32_0 = arith.constant 0 : i32
    %c0_i32_1 = arith.constant 0 : i32
    return %c0_i32, %c0_i32_0 : i32, i32
  }
  func.func @transform_2(%arg0: i32) -> (i32, i32) {
    %c0_i32 = arith.constant 0 : i32
    %c0_i32_0 = arith.constant 0 : i32
    return %arg0, %c0_i32 : i32, i32
  }
}

module attributes {stable_mosaic.version = 11 : i64} {
  func.func @embedding_kernel(%arg0: i32, %arg1: memref<16x1xi32, #tpu.memory_space<vmem>>, %arg2: memref<256x128xbf16, #tpu.memory_space<vmem>>, %arg3: memref<16x128xf32, #tpu.memory_space<vmem>>) attributes {dimension_semantics = [#tpu.dimension_semantics<parallel>], iteration_bounds = array<i64: 1>, scalar_prefetch = 0 : i64, scratch_operands = 0 : i64, tpu.core_type = #tpu.core_type<tc>, window_params = [{transform_indices = @transform_0, window_bounds = array<i64: 16, 1>}, {pipeline_mode = #tpu.pipeline_mode<synchronous>, transform_indices = @transform_1, window_bounds = array<i64: 256, 128>}, {transform_indices = @transform_2, window_bounds = array<i64: 16, 128>}]} {
    %c0 = arith.constant 0 : index
    %c0_0 = arith.constant 0 : index
    %0 = vector.load %arg1[%c0, %c0_0] : memref<16x1xi32, #tpu.memory_space<vmem>>, vector<16x1xi32>
    %c0_i32 = arith.constant 0 : i32
    %c255_i32 = arith.constant 255 : i32
    %1 = vector.broadcast %c0_i32 : i32 to vector<16x1xi32>
    %2 = arith.maxsi %1, %0 : vector<16x1xi32>
    %3 = vector.broadcast %c255_i32 : i32 to vector<16x1xi32>
    %4 = arith.minsi %3, %2 : vector<16x1xi32>
    %5 = tpu.iota {dimensions = array<i32: 1>} : vector<1x256xi32>
    %6 = vector.broadcast %4 : vector<16x1xi32> to vector<16x256xi32>
    %7 = vector.broadcast %5 : vector<1x256xi32> to vector<16x256xi32>
    %8 = arith.cmpi eq, %6, %7 : vector<16x256xi32>
    %9 = arith.extui %8 : vector<16x256xi1> to vector<16x256xi32>
    %10 = arith.sitofp %9 : vector<16x256xi32> to vector<16x256xf32>
    %11 = arith.truncf %10 : vector<16x256xf32> to vector<16x256xbf16>
    %c0_1 = arith.constant 0 : index
    %c0_2 = arith.constant 0 : index
    %12 = vector.load %arg2[%c0_1, %c0_2] : memref<256x128xbf16, #tpu.memory_space<vmem>>, vector<256x128xbf16>
    %cst = arith.constant dense<0.000000e+00> : vector<16x128xf32>
    %13 = tpu.matmul %11, %12, %cst {dimension_numbers = #tpu.dot_dimension_numbers<[1], [0], [0], [1], [0, 0, 1, 1], [], []>} : vector<16x256xbf16>, vector<256x128xbf16>, vector<16x128xf32> -> vector<16x128xf32>
    %c0_3 = arith.constant 0 : index
    %c0_4 = arith.constant 0 : index
    %14 = vector.load %arg3[%c0_3, %c0_4] : memref<16x128xf32, #tpu.memory_space<vmem>>, vector<16x128xf32>
    tpu.vector_store %arg3[%c0_3, %c0_4], %13 {strides = array<i32>} : memref<16x128xf32, #tpu.memory_space<vmem>>, vector<16x128xf32>,
    return
  }
  func.func @transform_0(%arg0: i32) -> (i32, i32) {
    %c0_i32 = arith.constant 0 : i32
    %c0_i32_0 = arith.constant 0 : i32
    return %arg0, %c0_i32 : i32, i32
  }
  func.func @transform_1(%arg0: i32) -> (i32, i32) {
    %c0_i32 = arith.constant 0 : i32
    %c0_i32_0 = arith.constant 0 : i32
    %c0_i32_1 = arith.constant 0 : i32
    return %c0_i32, %c0_i32_0 : i32, i32
  }
  func.func @transform_2(%arg0: i32) -> (i32, i32) {
    %c0_i32 = arith.constant 0 : i32
    %c0_i32_0 = arith.constant 0 : i32
    return %arg0, %c0_i32 : i32, i32
  }
}

</mosaic_0001>

<llo_original>
// kernel: tpu_custom_call.1
$region0: #{tpu_custom_call.1}
  #allocation0 [shape = 'u32[]', space=smem, size = 0x4, offset = 0x4, fixed_abs, tag = 'smem constant byte address 0x4 - core index']
  #allocation1 [shape = 'u32[72,128]{1,0:T(1,128)}', space=vmem, size = 0x9000, scoped, tag = 'internal scratch']
  %s0 = inlined_call_operand.vmem [shape: s32[16,1], index: 0, kind: input, shape index: {}]
  %s1 = inlined_call_operand.hbm [shape: bf16[256,128], index: 1, kind: input, shape index: {}]
  %s2 = inlined_call_operand.hbm [shape: f32[16,128], index: 2, kind: output, shape index: {}]
  %s3 = sld [smem:[#allocation0]]
  $region22: #{tpu_custom_call.1} parent=0
    _
  %s5 = ssub.s32 1, %s3
  %s6 = scalar_select 0, %s5, %s3
  $region1: #{tpu_custom_call.1} parent=0
    #allocation2 [shape = 'u8[65536]{0}', space=vmem, size = 0x10000, scoped, tag = 'input window, operand 1, single buffered']
    #allocation3 [shape = 's32[1]{0}', space=sflag, size = 0x4, scoped, tag = 'scoped memory for tpu_custom_call.1']
    #allocation4 [shape = 's32[1]{0}', space=sflag, size = 0x4, scoped, tag = 'scoped memory for tpu_custom_call.1']
    #allocation5 [shape = 'u8[8192]{0}', space=vmem, size = 0x2000, scoped, tag = 'output window, operand 0, single buffered']
    %7 = vsyncpa [#allocation3], 0
    %8 = vsyncpa [#allocation4], 0
    // Predicated region
    $region2: #{tpu_custom_call.1} parent=1 // pred_check
      _
    $region3: #{tpu_custom_call.1} parent=1 // pred_check_branch
      %10 = sbr.rel (0) target = $region5
    $region4: #{tpu_custom_call.1} parent=1 // pred_region
      _
    $region5: #{tpu_custom_call.1} parent=1 // pred_fallthru
      _
    // Predicated region
    $region6: #{tpu_custom_call.1} parent=1 // pred_check
      _
    $region7: #{tpu_custom_call.1} parent=1 // pred_check_branch
      %12 = sbr.rel (0) target = $region9
    $region8: #{tpu_custom_call.1} parent=1 // pred_region
      %14 = vsyncadd [#allocation3], 0
      %s15 = sshll.u32 %s1, 4
      %s16 = int_to_ptr.hbm [resolvable:$true] %s15
      %s17 = sshll.u32 [#allocation2], 4
      %s18 = int_to_ptr.vmem [resolvable:$true] %s17
      %23 = dma.hbm_to_vmem [thread:$0]  %s16, 2048, %s18, [#allocation3], 64, 64, 4
    $region9: #{tpu_custom_call.1} parent=1 // pred_fallthru
      _
    // Predicated region
    $region10: #{tpu_custom_call.1} parent=1 // pred_check
      _
    $region11: #{tpu_custom_call.1} parent=1 // pred_check_branch
      %25 = sbr.rel (0) target = $region13
    $region12: #{tpu_custom_call.1} parent=1 // pred_region
      %27 = dma.done [#allocation3], 2048
    $region13: #{tpu_custom_call.1} parent=1 // pred_fallthru
      _
    %v28 = vld [vmem:[%s0] sm:$0xff]
    %v29 = vld [vmem:[%s0 + $0x8] sm:$0xff]
    %vm30 = vcmp.gt.s32.totalorder %v28, 0
    %v31 = vsel %vm30, %v28, 0
    %vm32 = vcmp.gt.s32.totalorder %v29, 0
    %v33 = vsel %vm32, %v29, 0
    %vm34 = vcmp.lt.s32.totalorder %v31, 255
    %v35 = vsel %vm34, %v31, 255
    %vm36 = vcmp.lt.s32.totalorder %v33, 255
    %v37 = vsel %vm36, %v33, 255
    %v38 = vlaneseq
    %v39 = vand.u32 %v38, 127
    %v40 = vadd.s32 %v39, 128
    %41 = vset.pattern.permute.xlu0 0
    %42 = vperm.xlu0 %41, %v35
    %v43 = vpop.permute.xlu0 %42
    %44 = vset.pattern.permute.xlu0 0
    %45 = vperm.xlu0 %44, %v37
    %v46 = vpop.permute.xlu0 %45
    %vm47 = vcmp.eq.s32.totalorder %v43, %v39
    %vm48 = vcmp.eq.s32.totalorder %v43, %v40
    %vm49 = vcmp.eq.s32.totalorder %v46, %v39
    %vm50 = vcmp.eq.s32.totalorder %v46, %v40
    %v51 = vsel %vm47, 1, 0
    %v52 = vsel %vm48, 1, 0
    %v53 = vsel %vm49, 1, 0
    %v54 = vsel %vm50, 1, 0
    %v55 = vcvt.s32.f32 %v51
    %v56 = vcvt.s32.f32 %v52
    %v57 = vcvt.s32.f32 %v53
    %v58 = vcvt.s32.f32 %v54
    %v59 = vpack.c.bf16 %v57, %v55
    %v60 = vpack.c.bf16 %v58, %v56
    %v61 = vld [vmem:[#allocation2] sm:$0xf]
    %v62 = vld [vmem:[#allocation2 + $0x4] sm:$0xf]
    %v63 = vld [vmem:[#allocation2 + $0x8] sm:$0xf]
    %v64 = vld [vmem:[#allocation2 + $0xc] sm:$0xf]
    %v65 = vld [vmem:[#allocation2 + $0x10] sm:$0xf]
    %v66 = vld [vmem:[#allocation2 + $0x14] sm:$0xf]
    %v67 = vld [vmem:[#allocation2 + $0x18] sm:$0xf]
    %v68 = vld [vmem:[#allocation2 + $0x1c] sm:$0xf]
    %v69 = vld [vmem:[#allocation2 + $0x20] sm:$0xf]
    %v70 = vld [vmem:[#allocation2 + $0x24] sm:$0xf]
    %v71 = vld [vmem:[#allocation2 + $0x28] sm:$0xf]
    %v72 = vld [vmem:[#allocation2 + $0x2c] sm:$0xf]
    %v73 = vld [vmem:[#allocation2 + $0x30] sm:$0xf]
    %v74 = vld [vmem:[#allocation2 + $0x34] sm:$0xf]
    %v75 = vld [vmem:[#allocation2 + $0x38] sm:$0xf]
    %v76 = vld [vmem:[#allocation2 + $0x3c] sm:$0xf]
    %v77 = vld [vmem:[#allocation2 + $0x40] sm:$0xf]
    %v78 = vld [vmem:[#allocation2 + $0x44] sm:$0xf]
    %v79 = vld [vmem:[#allocation2 + $0x48] sm:$0xf]
    %v80 = vld [vmem:[#allocation2 + $0x4c] sm:$0xf]
    %v81 = vld [vmem:[#allocation2 + $0x50] sm:$0xf]
    %v82 = vld [vmem:[#allocation2 + $0x54] sm:$0xf]
    %v83 = vld [vmem:[#allocation2 + $0x58] sm:$0xf]
    %v84 = vld [vmem:[#allocation2 + $0x5c] sm:$0xf]
    %v85 = vld [vmem:[#allocation2 + $0x60] sm:$0xf]
    %v86 = vld [vmem:[#allocation2 + $0x64] sm:$0xf]
    %v87 = vld [vmem:[#allocation2 + $0x68] sm:$0xf]
    %v88 = vld [vmem:[#allocation2 + $0x6c] sm:$0xf]
    %v89 = vld [vmem:[#allocation2 + $0x70] sm:$0xf]
    %v90 = vld [vmem:[#allocation2 + $0x74] sm:$0xf]
    %v91 = vld [vmem:[#allocation2 + $0x78] sm:$0xf]
    %v92 = vld [vmem:[#allocation2 + $0x7c] sm:$0xf]
    %v125 = vunpack.c.l.b16 %v61
    %v126 = vunpack.c.l.b16 %v62
    %v127 = vunpack.c.l.b16 %v63
    %v128 = vunpack.c.l.b16 %v64
    %v129 = vunpack.c.l.b16 %v65
    %v130 = vunpack.c.l.b16 %v66
    %v131 = vunpack.c.l.b16 %v67
    %v132 = vunpack.c.l.b16 %v68
    %v133 = vunpack.c.l.b16 %v69
    %v134 = vunpack.c.l.b16 %v70
    %v135 = vunpack.c.l.b16 %v71
    %v136 = vunpack.c.l.b16 %v72
    %v137 = vunpack.c.l.b16 %v73
    %v138 = vunpack.c.l.b16 %v74
    %v139 = vunpack.c.l.b16 %v75
    %v140 = vunpack.c.l.b16 %v76
    %v141 = vunpack.c.l.b16 %v77
    %v142 = vunpack.c.l.b16 %v78
    %v143 = vunpack.c.l.b16 %v79
    %v144 = vunpack.c.l.b16 %v80
    %v145 = vunpack.c.l.b16 %v81
    %v146 = vunpack.c.l.b16 %v82
    %v147 = vunpack.c.l.b16 %v83
    %v148 = vunpack.c.l.b16 %v84
    %v149 = vunpack.c.l.b16 %v85
    %v150 = vunpack.c.l.b16 %v86
    %v151 = vunpack.c.l.b16 %v87
    %v152 = vunpack.c.l.b16 %v88
    %v153 = vunpack.c.l.b16 %v89
    %v154 = vunpack.c.l.b16 %v90
    %v155 = vunpack.c.l.b16 %v91
    %v156 = vunpack.c.l.b16 %v92
    %v157 = vpack.c.b16 %v126, %v125
    %v158 = vpack.c.b16 %v128, %v127
    %v159 = vpack.c.b16 %v130, %v129
    %v160 = vpack.c.b16 %v132, %v131
    %v161 = vpack.c.b16 %v134, %v133
    %v162 = vpack.c.b16 %v136, %v135
    %v163 = vpack.c.b16 %v138, %v137
    %v164 = vpack.c.b16 %v140, %v139
    %v165 = vpack.c.b16 %v142, %v141
    %v166 = vpack.c.b16 %v144, %v143
    %v167 = vpack.c.b16 %v146, %v145
    %v168 = vpack.c.b16 %v148, %v147
    %v169 = vpack.c.b16 %v150, %v149
    %v170 = vpack.c.b16 %v152, %v151
    %v171 = vpack.c.b16 %v154, %v153
    %v172 = vpack.c.b16 %v156, %v155
    %189 = vmatpush.bf16.msra.mxu0 %v164
    %190 = vmatpush.bf16.msra.mxu0 %v163
    %191 = vmatpush.bf16.msra.mxu0 %v162
    %192 = vmatpush.bf16.msra.mxu0 %v161
    %193 = vmatpush.bf16.msra.mxu0 %v160
    %194 = vmatpush.bf16.msra.mxu0 %v159
    %195 = vmatpush.bf16.msra.mxu0 %v158
    %196 = vmatpush.bf16.msra.mxu0 %v157
    %197 = vmatmul.bf16.gmra.mxu0 %v59
    %v198 = vpop.f32.mrf.mxu0
    %v199 = vadd.f32 0.0, %v198
    %v200 = vpop.f32.mrf.mxu0
    %v201 = vadd.f32 0.0, %v200
    %202 = vdwg.mxu0
    %203 = vmatpush.bf16.msra.mxu0 %v172
    %204 = vmatpush.bf16.msra.mxu0 %v171
    %205 = vmatpush.bf16.msra.mxu0 %v170
    %206 = vmatpush.bf16.msra.mxu0 %v169
    %207 = vmatpush.bf16.msra.mxu0 %v168
    %208 = vmatpush.bf16.msra.mxu0 %v167
    %209 = vmatpush.bf16.msra.mxu0 %v166
    %210 = vmatpush.bf16.msra.mxu0 %v165
    %211 = vmatmul.bf16.gmra.mxu0 %v60
    %v212 = vpop.f32.mrf.mxu0
    %v213 = vadd.f32 %v199, %v212
    %v214 = vpop.f32.mrf.mxu0
    %v215 = vadd.f32 %v201, %v214
    %216 = vdwg.mxu0
    %217 = vst [vmem:[#allocation5] sm:$0xff] %v213
    %218 = vst [vmem:[#allocation5 + $0x8] sm:$0xff] %v215
    // Predicated region
    $region14: #{tpu_custom_call.1} parent=1 // pred_check
      _
    $region15: #{tpu_custom_call.1} parent=1 // pred_check_branch
      %220 = sbr.rel (0) target = $region17
    $region16: #{tpu_custom_call.1} parent=1 // pred_region
      %222 = vsyncadd [#allocation4], 0
      %s223 = sshll.u32 [#allocation5], 4
      %s224 = int_to_ptr.vmem [resolvable:$true] %s223
      %s225 = sshll.u32 %s2, 4
      %s226 = int_to_ptr.hbm [resolvable:$true] %s225
      %231 = dma.vmem_to_hbm [thread:$0]  %s224, 256, %s226, [#allocation4], 128, 128, 8
    $region17: #{tpu_custom_call.1} parent=1 // pred_fallthru
      _
    // Predicated region
    $region18: #{tpu_custom_call.1} parent=1 // pred_check
      _
    $region19: #{tpu_custom_call.1} parent=1 // pred_check_branch
      %233 = sbr.rel (0) target = $region21
    $region20: #{tpu_custom_call.1} parent=1 // pred_region
      %235 = dma.done [#allocation4], 256
    $region21: #{tpu_custom_call.1} parent=1 // pred_fallthru
      _
    %236 = vsyncpa [#allocation3], 1
    %237 = vsyncpa [#allocation4], 1

// kernel: tpu_custom_call.1
$region0: #{tpu_custom_call.1}
  #allocation0 [shape = 'u32[]', space=smem, size = 0x4, offset = 0x4, fixed_abs, tag = 'smem constant byte address 0x4 - core index']
  #allocation1 [shape = 'u32[72,128]{1,0:T(1,128)}', space=vmem, size = 0x9000, scoped, tag = 'internal scratch']
  %s0 = inlined_call_operand.vmem [shape: s32[16,1], index: 0, kind: input, shape index: {}]
  %s1 = inlined_call_operand.hbm [shape: bf16[256,128], index: 1, kind: input, shape index: {}]
  %s2 = inlined_call_operand.hbm [shape: f32[16,128], index: 2, kind: output, shape index: {}]
  %s3 = sld [smem:[#allocation0]]
  $region22: #{tpu_custom_call.1} parent=0
    _
  %s5 = ssub.s32 1, %s3
  %s6 = scalar_select 0, %s5, %s3
  $region1: #{tpu_custom_call.1} parent=0
    #allocation2 [shape = 'u8[65536]{0}', space=vmem, size = 0x10000, scoped, tag = 'input window, operand 1, single buffered']
    #allocation3 [shape = 's32[1]{0}', space=sflag, size = 0x4, scoped, tag = 'scoped memory for tpu_custom_call.1']
    #allocation4 [shape = 's32[1]{0}', space=sflag, size = 0x4, scoped, tag = 'scoped memory for tpu_custom_call.1']
    #allocation5 [shape = 'u8[8192]{0}', space=vmem, size = 0x2000, scoped, tag = 'output window, operand 0, single buffered']
    %7 = vsyncpa [#allocation3], 0
    %8 = vsyncpa [#allocation4], 0
    // Predicated region
    $region2: #{tpu_custom_call.1} parent=1 // pred_check
      _
    $region3: #{tpu_custom_call.1} parent=1 // pred_check_branch
      %10 = sbr.rel (0) target = $region5
    $region4: #{tpu_custom_call.1} parent=1 // pred_region
      _
    $region5: #{tpu_custom_call.1} parent=1 // pred_fallthru
      _
    // Predicated region
    $region6: #{tpu_custom_call.1} parent=1 // pred_check
      _
    $region7: #{tpu_custom_call.1} parent=1 // pred_check_branch
      %12 = sbr.rel (0) target = $region9
    $region8: #{tpu_custom_call.1} parent=1 // pred_region
      %14 = vsyncadd [#allocation3], 0
      %s15 = sshll.u32 %s1, 4
      %s16 = int_to_ptr.hbm [resolvable:$true] %s15
      %s17 = sshll.u32 [#allocation2], 4
      %s18 = int_to_ptr.vmem [resolvable:$true] %s17
      %23 = dma.hbm_to_vmem [thread:$0]  %s16, 2048, %s18, [#allocation3], 64, 64, 4
    $region9: #{tpu_custom_call.1} parent=1 // pred_fallthru
      _
    // Predicated region
    $region10: #{tpu_custom_call.1} parent=1 // pred_check
      _
    $region11: #{tpu_custom_call.1} parent=1 // pred_check_branch
      %25 = sbr.rel (0) target = $region13
    $region12: #{tpu_custom_call.1} parent=1 // pred_region
      %27 = dma.done [#allocation3], 2048
    $region13: #{tpu_custom_call.1} parent=1 // pred_fallthru
      _
    %v28 = vld [vmem:[%s0] sm:$0xff]
    %v29 = vld [vmem:[%s0 + $0x8] sm:$0xff]
    %vm30 = vcmp.gt.s32.totalorder %v28, 0
    %v31 = vsel %vm30, %v28, 0
    %vm32 = vcmp.gt.s32.totalorder %v29, 0
    %v33 = vsel %vm32, %v29, 0
    %vm34 = vcmp.lt.s32.totalorder %v31, 255
    %v35 = vsel %vm34, %v31, 255
    %vm36 = vcmp.lt.s32.totalorder %v33, 255
    %v37 = vsel %vm36, %v33, 255
    %v38 = vlaneseq
    %v39 = vand.u32 %v38, 127
    %v40 = vadd.s32 %v39, 128
    %41 = vset.pattern.permute.xlu0 0
    %42 = vperm.xlu0 %41, %v35
    %v43 = vpop.permute.xlu0 %42
    %44 = vset.pattern.permute.xlu0 0
    %45 = vperm.xlu0 %44, %v37
    %v46 = vpop.permute.xlu0 %45
    %vm47 = vcmp.eq.s32.totalorder %v43, %v39
    %vm48 = vcmp.eq.s32.totalorder %v43, %v40
    %vm49 = vcmp.eq.s32.totalorder %v46, %v39
    %vm50 = vcmp.eq.s32.totalorder %v46, %v40
    %v51 = vsel %vm47, 1, 0
    %v52 = vsel %vm48, 1, 0
    %v53 = vsel %vm49, 1, 0
    %v54 = vsel %vm50, 1, 0
    %v55 = vcvt.s32.f32 %v51
    %v56 = vcvt.s32.f32 %v52
    %v57 = vcvt.s32.f32 %v53
    %v58 = vcvt.s32.f32 %v54
    %v59 = vpack.c.bf16 %v57, %v55
    %v60 = vpack.c.bf16 %v58, %v56
    %v61 = vld [vmem:[#allocation2] sm:$0xf]
    %v62 = vld [vmem:[#allocation2 + $0x4] sm:$0xf]
    %v63 = vld [vmem:[#allocation2 + $0x8] sm:$0xf]
    %v64 = vld [vmem:[#allocation2 + $0xc] sm:$0xf]
    %v65 = vld [vmem:[#allocation2 + $0x10] sm:$0xf]
    %v66 = vld [vmem:[#allocation2 + $0x14] sm:$0xf]
    %v67 = vld [vmem:[#allocation2 + $0x18] sm:$0xf]
    %v68 = vld [vmem:[#allocation2 + $0x1c] sm:$0xf]
    %v69 = vld [vmem:[#allocation2 + $0x20] sm:$0xf]
    %v70 = vld [vmem:[#allocation2 + $0x24] sm:$0xf]
    %v71 = vld [vmem:[#allocation2 + $0x28] sm:$0xf]
    %v72 = vld [vmem:[#allocation2 + $0x2c] sm:$0xf]
    %v73 = vld [vmem:[#allocation2 + $0x30] sm:$0xf]
    %v74 = vld [vmem:[#allocation2 + $0x34] sm:$0xf]
    %v75 = vld [vmem:[#allocation2 + $0x38] sm:$0xf]
    %v76 = vld [vmem:[#allocation2 + $0x3c] sm:$0xf]
    %v77 = vld [vmem:[#allocation2 + $0x40] sm:$0xf]
    %v78 = vld [vmem:[#allocation2 + $0x44] sm:$0xf]
    %v79 = vld [vmem:[#allocation2 + $0x48] sm:$0xf]
    %v80 = vld [vmem:[#allocation2 + $0x4c] sm:$0xf]
    %v81 = vld [vmem:[#allocation2 + $0x50] sm:$0xf]
    %v82 = vld [vmem:[#allocation2 + $0x54] sm:$0xf]
    %v83 = vld [vmem:[#allocation2 + $0x58] sm:$0xf]
    %v84 = vld [vmem:[#allocation2 + $0x5c] sm:$0xf]
    %v85 = vld [vmem:[#allocation2 + $0x60] sm:$0xf]
    %v86 = vld [vmem:[#allocation2 + $0x64] sm:$0xf]
    %v87 = vld [vmem:[#allocation2 + $0x68] sm:$0xf]
    %v88 = vld [vmem:[#allocation2 + $0x6c] sm:$0xf]
    %v89 = vld [vmem:[#allocation2 + $0x70] sm:$0xf]
    %v90 = vld [vmem:[#allocation2 + $0x74] sm:$0xf]
    %v91 = vld [vmem:[#allocation2 + $0x78] sm:$0xf]
    %v92 = vld [vmem:[#allocation2 + $0x7c] sm:$0xf]
    %v125 = vunpack.c.l.b16 %v61
    %v126 = vunpack.c.l.b16 %v62
    %v127 = vunpack.c.l.b16 %v63
    %v128 = vunpack.c.l.b16 %v64
    %v129 = vunpack.c.l.b16 %v65
    %v130 = vunpack.c.l.b16 %v66
    %v131 = vunpack.c.l.b16 %v67
    %v132 = vunpack.c.l.b16 %v68
    %v133 = vunpack.c.l.b16 %v69
    %v134 = vunpack.c.l.b16 %v70
    %v135 = vunpack.c.l.b16 %v71
    %v136 = vunpack.c.l.b16 %v72
    %v137 = vunpack.c.l.b16 %v73
    %v138 = vunpack.c.l.b16 %v74
    %v139 = vunpack.c.l.b16 %v75
    %v140 = vunpack.c.l.b16 %v76
    %v141 = vunpack.c.l.b16 %v77
    %v142 = vunpack.c.l.b16 %v78
    %v143 = vunpack.c.l.b16 %v79
    %v144 = vunpack.c.l.b16 %v80
    %v145 = vunpack.c.l.b16 %v81
    %v146 = vunpack.c.l.b16 %v82
    %v147 = vunpack.c.l.b16 %v83
    %v148 = vunpack.c.l.b16 %v84
    %v149 = vunpack.c.l.b16 %v85
    %v150 = vunpack.c.l.b16 %v86
    %v151 = vunpack.c.l.b16 %v87
    %v152 = vunpack.c.l.b16 %v88
    %v153 = vunpack.c.l.b16 %v89
    %v154 = vunpack.c.l.b16 %v90
    %v155 = vunpack.c.l.b16 %v91
    %v156 = vunpack.c.l.b16 %v92
    %v157 = vpack.c.b16 %v126, %v125
    %v158 = vpack.c.b16 %v128, %v127
    %v159 = vpack.c.b16 %v130, %v129
    %v160 = vpack.c.b16 %v132, %v131
    %v161 = vpack.c.b16 %v134, %v133
    %v162 = vpack.c.b16 %v136, %v135
    %v163 = vpack.c.b16 %v138, %v137
    %v164 = vpack.c.b16 %v140, %v139
    %v165 = vpack.c.b16 %v142, %v141
    %v166 = vpack.c.b16 %v144, %v143
    %v167 = vpack.c.b16 %v146, %v145
    %v168 = vpack.c.b16 %v148, %v147
    %v169 = vpack.c.b16 %v150, %v149
    %v170 = vpack.c.b16 %v152, %v151
    %v171 = vpack.c.b16 %v154, %v153
    %v172 = vpack.c.b16 %v156, %v155
    %189 = vmatpush.bf16.msra.mxu0 %v164
    %190 = vmatpush.bf16.msra.mxu0 %v163
    %191 = vmatpush.bf16.msra.mxu0 %v162
    %192 = vmatpush.bf16.msra.mxu0 %v161
    %193 = vmatpush.bf16.msra.mxu0 %v160
    %194 = vmatpush.bf16.msra.mxu0 %v159
    %195 = vmatpush.bf16.msra.mxu0 %v158
    %196 = vmatpush.bf16.msra.mxu0 %v157
    %197 = vmatmul.bf16.gmra.mxu0 %v59
    %v198 = vpop.f32.mrf.mxu0
    %v199 = vadd.f32 0.0, %v198
    %v200 = vpop.f32.mrf.mxu0
    %v201 = vadd.f32 0.0, %v200
    %202 = vdwg.mxu0
    %203 = vmatpush.bf16.msra.mxu0 %v172
    %204 = vmatpush.bf16.msra.mxu0 %v171
    %205 = vmatpush.bf16.msra.mxu0 %v170
    %206 = vmatpush.bf16.msra.mxu0 %v169
    %207 = vmatpush.bf16.msra.mxu0 %v168
    %208 = vmatpush.bf16.msra.mxu0 %v167
    %209 = vmatpush.bf16.msra.mxu0 %v166
    %210 = vmatpush.bf16.msra.mxu0 %v165
    %211 = vmatmul.bf16.gmra.mxu0 %v60
    %v212 = vpop.f32.mrf.mxu0
    %v213 = vadd.f32 %v199, %v212
    %v214 = vpop.f32.mrf.mxu0
    %v215 = vadd.f32 %v201, %v214
    %216 = vdwg.mxu0
    %217 = vst [vmem:[#allocation5] sm:$0xff] %v213
    %218 = vst [vmem:[#allocation5 + $0x8] sm:$0xff] %v215
    // Predicated region
    $region14: #{tpu_custom_call.1} parent=1 // pred_check
      _
    $region15: #{tpu_custom_call.1} parent=1 // pred_check_branch
      %220 = sbr.rel (0) target = $region17
    $region16: #{tpu_custom_call.1} parent=1 // pred_region
      %222 = vsyncadd [#allocation4], 0
      %s223 = sshll.u32 [#allocation5], 4
      %s224 = int_to_ptr.vmem [resolvable:$true] %s223
      %s225 = sshll.u32 %s2, 4
      %s226 = int_to_ptr.hbm [resolvable:$true] %s225
      %231 = dma.vmem_to_hbm [thread:$0]  %s224, 256, %s226, [#allocation4], 128, 128, 8
    $region17: #{tpu_custom_call.1} parent=1 // pred_fallthru
      _
    // Predicated region
    $region18: #{tpu_custom_call.1} parent=1 // pred_check
      _
    $region19: #{tpu_custom_call.1} parent=1 // pred_check_branch
      %233 = sbr.rel (0) target = $region21
    $region20: #{tpu_custom_call.1} parent=1 // pred_region
      %235 = dma.done [#allocation4], 256
    $region21: #{tpu_custom_call.1} parent=1 // pred_fallthru
      _
    %236 = vsyncpa [#allocation3], 1
    %237 = vsyncpa [#allocation4], 1

</llo_original>
